<compile_context>
chip_gen: v5e
topology: v5e:2x2
jax: 0.10.0
libtpu: 0.0.40
codegen_flags: <defaults>
</compile_context>

<pallas_src>
import jax
import jax.numpy as jnp
from jax.experimental import pallas as pl
from jax.experimental.pallas import tpu as pltpu

HIDDEN_SIZES = [5, 3]
LANE = 128
SUBLANE = 8
MAX_BATCH_TILE = 8192


def _ceil_to(n, m):
    return -(-n // m) * m


def _pad_to(a, shape):
    return jnp.pad(a, [(0, t - s) for s, t in zip(a.shape, shape)])


def _dbn_kernel(x_ref, w1_ref, b1_ref, w2_ref, b2_ref, o_ref):
    h2 = o_ref.shape[-1]  # true output width (3)
    # Layer 1: f32 MXU matmul (K = input_size), f32 bias-add + ReLU.
    # Weight/bias lanes beyond the true hidden size are zero, so padded lanes stay 0.
    h = jnp.dot(x_ref[...], w1_ref[...], preferred_element_type=jnp.float32)
    h = jnp.maximum(h + b1_ref[...], 0.0)
    # Layer 2: f32 MXU matmul; slice to the true output width, bias-add + ReLU,
    # and store the narrow (tb, 3) block directly (masked store, ~12 B/row writeback).
    y = jnp.dot(h, w2_ref[...], preferred_element_type=jnp.float32)
    y = jnp.maximum(y[:, :h2] + b2_ref[...], 0.0)
    o_ref[...] = y.astype(o_ref.dtype)


def init_dbn_params(key, input_size, hidden_sizes=HIDDEN_SIZES):
    """nn.Linear-style uniform init; weights stored as (in, out) so y = x @ W + b."""
    params = []
    prev = input_size
    for h in hidden_sizes:
        key, kw, kb = jax.random.split(key, 3)
        bound = 1.0 / (prev ** 0.5)
        w = jax.random.uniform(kw, (prev, h), jnp.float32, -bound, bound)
        b = jax.random.uniform(kb, (h,), jnp.float32, -bound, bound)
        params.append((w, b))
        prev = h
    return params


def prepare_dbn_params(params):
    """One-time prep (outside the per-call path): zero-pad the tiny, VMEM-resident
    weights/bias-1 to 128 lanes so both contractions are lane-aligned; bias-2 keeps its
    true width so the kernel knows the real output extent. Everything stays f32."""
    (w1, b1), (w2, b2) = params
    in_size, h1 = w1.shape
    h2 = w2.shape[1]
    h1p = _ceil_to(h1, LANE)
    h2p = _ceil_to(h2, LANE)
    w1_p = _pad_to(w1, (in_size, h1p)).astype(jnp.float32)
    b1_p = _pad_to(b1.reshape(1, -1), (1, h1p)).astype(jnp.float32)
    w2_p = _pad_to(w2, (h1p, h2p)).astype(jnp.float32)
    b2_p = b2.reshape(1, -1).astype(jnp.float32)
    return (w1_p, b1_p, w2_p, b2_p)


def _choose_batch_tile(batch):
    if batch <= SUBLANE:
        return batch  # single full-extent tile (block dim == full array dim is legal)
    # >= 2 grid steps (v7x megacore sharding) while keeping tiles as large as possible.
    half = _ceil_to(pl.cdiv(batch, 2), SUBLANE)
    return min(MAX_BATCH_TILE, half)


@jax.jit
def dbn_forward(x, packed):
    """x: (B, input_size) float32. packed: output of prepare_dbn_params. Returns (B, 3) f32."""
    w1_p, b1_p, w2_p, b2_p = packed
    B, in_size = x.shape
    h1p = w1_p.shape[1]
    h2p = w2_p.shape[1]
    h2 = b2_p.shape[1]

    tb = _choose_batch_tile(B)
    grid = (pl.cdiv(B, tb),)

    cost = pl.CostEstimate(
        flops=int(2 * B * (in_size * h1p + h1p * h2p)),
        transcendentals=0,
        bytes_accessed=int(
            B * in_size * 4 + B * h2 * 4
            + (in_size * h1p + h1p + h1p * h2p + h2) * 4
        ),
    )

    return pl.pallas_call(
        _dbn_kernel,
        out_shape=jax.ShapeDtypeStruct((B, h2), jnp.float32),
        grid=grid,
        in_specs=[
            # x: streamed per batch tile, true feature width, f32 straight from caller.
            pl.BlockSpec((tb, in_size), lambda i: (i, 0)),
            # weights / biases: VMEM-resident across all grid steps.
            pl.BlockSpec((in_size, h1p), lambda i: (0, 0)),
            pl.BlockSpec((1, h1p), lambda i: (0, 0)),
            pl.BlockSpec((h1p, h2p), lambda i: (0, 0)),
            pl.BlockSpec((1, h2), lambda i: (0, 0)),
        ],
        # True-width output block: last dim (3) equals the full array dim -> legal.
        out_specs=pl.BlockSpec((tb, h2), lambda i: (i, 0)),
        compiler_params=pltpu.CompilerParams(
            dimension_semantics=("parallel",),
            vmem_limit_bytes=48 * 1024 * 1024,
        ),
        cost_estimate=cost,
    )(x, w1_p, b1_p, w2_p, b2_p)


def dbn_reference(x, params):
    for w, b in params:
        x = jnp.maximum(x @ w + b, 0.0)
    return x


if __name__ == "__main__":
    key = jax.random.PRNGKey(0)
    k_x, k_x2, k_p = jax.random.split(key, 3)

    batch, input_size = 2, 16
    params = init_dbn_params(k_p, input_size, HIDDEN_SIZES)
    packed = prepare_dbn_params(params)

    # Small-shape run (single full-extent batch tile, grid=(1,)).
    x = jax.random.normal(k_x, (batch, input_size), jnp.float32)
    out = jax.block_until_ready(dbn_forward(x, packed))
    ref = dbn_reference(x, params)
    assert out.shape == (batch, HIDDEN_SIZES[-1]), out.shape
    assert jnp.allclose(out, ref, atol=1e-2, rtol=1e-2), (out, ref)

    # Larger batch exercises the 2-step pipelined grid with a ragged (write-clipped) last tile.
    x2 = jax.random.normal(k_x2, (600, input_size), jnp.float32)
    out2 = jax.block_until_ready(dbn_forward(x2, packed))
    ref2 = dbn_reference(x2, params)
    assert out2.shape == (600, HIDDEN_SIZES[-1]), out2.shape
    assert jnp.allclose(out2, ref2, atol=1e-2, rtol=1e-2)

    print("KERNEL_OK")
</pallas_src>

<mosaic_0001>
module attributes {stable_mosaic.version = 11 : i64} {
  func.func @_dbn_kernel(%arg0: i32, %arg1: memref<2x16xf32, #tpu.memory_space<vmem>>, %arg2: memref<16x128xf32, #tpu.memory_space<vmem>>, %arg3: memref<1x128xf32, #tpu.memory_space<vmem>>, %arg4: memref<128x128xf32, #tpu.memory_space<vmem>>, %arg5: memref<1x3xf32, #tpu.memory_space<vmem>>, %arg6: memref<2x3xf32, #tpu.memory_space<vmem>>) attributes {dimension_semantics = [#tpu.dimension_semantics<parallel>], iteration_bounds = array<i64: 1>, scalar_prefetch = 0 : i64, scratch_operands = 0 : i64, tpu.core_type = #tpu.core_type<tc>, window_params = [{transform_indices = @transform_0, window_bounds = array<i64: 2, 16>}, {pipeline_mode = #tpu.pipeline_mode<synchronous>, transform_indices = @transform_1, window_bounds = array<i64: 16, 128>}, {pipeline_mode = #tpu.pipeline_mode<synchronous>, transform_indices = @transform_2, window_bounds = array<i64: 1, 128>}, {pipeline_mode = #tpu.pipeline_mode<synchronous>, transform_indices = @transform_3, window_bounds = array<i64: 128, 128>}, {pipeline_mode = #tpu.pipeline_mode<synchronous>, transform_indices = @transform_4, window_bounds = array<i64: 1, 3>}, {transform_indices = @transform_5, window_bounds = array<i64: 2, 3>}]} {
    %c0 = arith.constant 0 : index
    %c0_0 = arith.constant 0 : index
    %0 = vector.load %arg1[%c0, %c0_0] : memref<2x16xf32, #tpu.memory_space<vmem>>, vector<2x16xf32>
    %c0_1 = arith.constant 0 : index
    %c0_2 = arith.constant 0 : index
    %1 = vector.load %arg2[%c0_1, %c0_2] : memref<16x128xf32, #tpu.memory_space<vmem>>, vector<16x128xf32>
    %cst = arith.constant dense<0.000000e+00> : vector<2x128xf32>
    %2 = tpu.matmul %0, %1, %cst {dimension_numbers = #tpu.dot_dimension_numbers<[1], [0], [0], [1], [0, 0, 1, 1], [], []>} : vector<2x16xf32>, vector<16x128xf32>, vector<2x128xf32> -> vector<2x128xf32>
    %c0_3 = arith.constant 0 : index
    %c0_4 = arith.constant 0 : index
    %3 = vector.load %arg3[%c0_3, %c0_4] : memref<1x128xf32, #tpu.memory_space<vmem>>, vector<1x128xf32>
    %4 = vector.broadcast %3 : vector<1x128xf32> to vector<2x128xf32>
    %5 = arith.addf %2, %4 : vector<2x128xf32>
    %cst_5 = arith.constant 0.000000e+00 : f32
    %6 = vector.broadcast %cst_5 : f32 to vector<2x128xf32>
    %7 = arith.maximumf %5, %6 : vector<2x128xf32>
    %c0_6 = arith.constant 0 : index
    %c0_7 = arith.constant 0 : index
    %8 = vector.load %arg4[%c0_6, %c0_7] : memref<128x128xf32, #tpu.memory_space<vmem>>, vector<128x128xf32>
    %cst_8 = arith.constant dense<0.000000e+00> : vector<2x128xf32>
    %9 = tpu.matmul %7, %8, %cst_8 {dimension_numbers = #tpu.dot_dimension_numbers<[1], [0], [0], [1], [0, 0, 1, 1], [], []>} : vector<2x128xf32>, vector<128x128xf32>, vector<2x128xf32> -> vector<2x128xf32>
    %10 = vector.extract_strided_slice %9 {offsets = [0, 0], sizes = [2, 3], strides = [1, 1]} : vector<2x128xf32> to vector<2x3xf32>
    %c0_9 = arith.constant 0 : index
    %c0_10 = arith.constant 0 : index
    %11 = vector.load %arg5[%c0_9, %c0_10] : memref<1x3xf32, #tpu.memory_space<vmem>>, vector<1x3xf32>
    %12 = vector.broadcast %11 : vector<1x3xf32> to vector<2x3xf32>
    %13 = arith.addf %10, %12 : vector<2x3xf32>
    %cst_11 = arith.constant 0.000000e+00 : f32
    %14 = vector.broadcast %cst_11 : f32 to vector<2x3xf32>
    %15 = arith.maximumf %13, %14 : vector<2x3xf32>
    %c0_12 = arith.constant 0 : index
    %c0_13 = arith.constant 0 : index
    %16 = vector.load %arg6[%c0_12, %c0_13] : memref<2x3xf32, #tpu.memory_space<vmem>>, vector<2x3xf32>
    tpu.vector_store %arg6[%c0_12, %c0_13], %15 {strides = array<i32>} : memref<2x3xf32, #tpu.memory_space<vmem>>, vector<2x3xf32>,
    return
  }
  func.func @transform_0(%arg0: i32) -> (i32, i32) {
    %c0_i32 = arith.constant 0 : i32
    %c0_i32_0 = arith.constant 0 : i32
    return %arg0, %c0_i32 : i32, i32
  }
  func.func @transform_1(%arg0: i32) -> (i32, i32) {
    %c0_i32 = arith.constant 0 : i32
    %c0_i32_0 = arith.constant 0 : i32
    %c0_i32_1 = arith.constant 0 : i32
    return %c0_i32, %c0_i32_0 : i32, i32
  }
  func.func @transform_2(%arg0: i32) -> (i32, i32) {
    %c0_i32 = arith.constant 0 : i32
    %c0_i32_0 = arith.constant 0 : i32
    %c0_i32_1 = arith.constant 0 : i32
    return %c0_i32, %c0_i32_0 : i32, i32
  }
  func.func @transform_3(%arg0: i32) -> (i32, i32) {
    %c0_i32 = arith.constant 0 : i32
    %c0_i32_0 = arith.constant 0 : i32
    %c0_i32_1 = arith.constant 0 : i32
    return %c0_i32, %c0_i32_0 : i32, i32
  }
  func.func @transform_4(%arg0: i32) -> (i32, i32) {
    %c0_i32 = arith.constant 0 : i32
    %c0_i32_0 = arith.constant 0 : i32
    %c0_i32_1 = arith.constant 0 : i32
    return %c0_i32, %c0_i32_0 : i32, i32
  }
  func.func @transform_5(%arg0: i32) -> (i32, i32) {
    %c0_i32 = arith.constant 0 : i32
    %c0_i32_0 = arith.constant 0 : i32
    return %arg0, %c0_i32 : i32, i32
  }
}

</mosaic_0001>

<llo_original>
// kernel: dbn_forward.1
$region0: #{dbn_forward.1}
  #allocation0 [shape = 'u32[]', space=smem, size = 0x4, offset = 0x4, fixed_abs, tag = 'smem constant byte address 0x4 - core index']
  #allocation1 [shape = 'u32[72,128]{1,0:T(1,128)}', space=vmem, size = 0x9000, scoped, tag = 'internal scratch']
  %s0 = inlined_call_operand.hbm [shape: f32[2,16], index: 0, kind: input, shape index: {}]
  %s1 = inlined_call_operand.hbm [shape: f32[16,128], index: 1, kind: input, shape index: {}]
  %s2 = inlined_call_operand.vmem [shape: f32[1,128], index: 2, kind: input, shape index: {}]
  %s3 = inlined_call_operand.hbm [shape: f32[128,128], index: 3, kind: input, shape index: {}]
  %s4 = inlined_call_operand.vmem [shape: f32[1,3], index: 4, kind: input, shape index: {}]
  %s5 = inlined_call_operand.hbm [shape: f32[2,3], index: 5, kind: output, shape index: {}]
  %s6 = sld [smem:[#allocation0]]
  $region42: #{dbn_forward.1} parent=0
    _
  %s8 = ssub.s32 1, %s6
  %s9 = scalar_select 0, %s8, %s6
  $region1: #{dbn_forward.1} parent=0
    #allocation2 [shape = 'u8[1024]{0}', space=vmem, size = 0x400, scoped, tag = 'input window, operand 0, single buffered']
    #allocation3 [shape = 's32[1]{0}', space=sflag, size = 0x4, scoped, tag = 'scoped memory for dbn_forward.1']
    #allocation4 [shape = 's32[1]{0}', space=sflag, size = 0x4, scoped, tag = 'scoped memory for dbn_forward.1']
    #allocation5 [shape = 'u8[8192]{0}', space=vmem, size = 0x2000, scoped, tag = 'input window, operand 1, single buffered']
    #allocation6 [shape = 's32[1]{0}', space=sflag, size = 0x4, scoped, tag = 'scoped memory for dbn_forward.1']
    #allocation7 [shape = 'u8[65536]{0}', space=vmem, size = 0x10000, scoped, tag = 'input window, operand 3, single buffered']
    #allocation8 [shape = 'u8[1024]{0}', space=vmem, size = 0x400, scoped, tag = 'output window, operand 0, single buffered']
    %10 = vsyncpa [#allocation3], 0
    %11 = vsyncpa [#allocation6], 0
    %12 = vsyncpa [#allocation4], 0
    // Predicated region
    $region2: #{dbn_forward.1} parent=1 // pred_check
      _
    $region3: #{dbn_forward.1} parent=1 // pred_check_branch
      %14 = sbr.rel (0) target = $region5
    $region4: #{dbn_forward.1} parent=1 // pred_region
      %16 = vsyncadd [#allocation3], 0
      %s18 = sshll.u32 %s0, 4
      %s19 = int_to_ptr.hbm [resolvable:$true] %s18
      %s20 = sshll.u32 [#allocation2], 4
      %s21 = int_to_ptr.vmem [resolvable:$true] %s20
      %23 = dma.hbm_to_vmem [thread:$0]  %s19, 32, %s21, [#allocation3]
    $region5: #{dbn_forward.1} parent=1 // pred_fallthru
      _
    // Predicated region
    $region6: #{dbn_forward.1} parent=1 // pred_check
      _
    $region7: #{dbn_forward.1} parent=1 // pred_check_branch
      %25 = sbr.rel (0) target = $region9
    $region8: #{dbn_forward.1} parent=1 // pred_region
      %27 = vsyncadd [#allocation6], 0
      %s28 = sshll.u32 %s1, 4
      %s29 = int_to_ptr.hbm [resolvable:$true] %s28
      %s30 = sshll.u32 [#allocation5], 4
      %s31 = int_to_ptr.vmem [resolvable:$true] %s30
      %36 = dma.hbm_to_vmem [thread:$0]  %s29, 256, %s31, [#allocation6], 128, 128, 8
    $region9: #{dbn_forward.1} parent=1 // pred_fallthru
      _
    // Predicated region
    $region10: #{dbn_forward.1} parent=1 // pred_check
      _
    $region11: #{dbn_forward.1} parent=1 // pred_check_branch
      %38 = sbr.rel (0) target = $region13
    $region12: #{dbn_forward.1} parent=1 // pred_region
      _
    $region13: #{dbn_forward.1} parent=1 // pred_fallthru
      _
    // Predicated region
    $region14: #{dbn_forward.1} parent=1 // pred_check
      _
    $region15: #{dbn_forward.1} parent=1 // pred_check_branch
      %40 = sbr.rel (0) target = $region17
    $region16: #{dbn_forward.1} parent=1 // pred_region
      %42 = vsyncadd [#allocation6], 0
      %s43 = sshll.u32 %s3, 4
      %s44 = int_to_ptr.hbm [resolvable:$true] %s43
      %s45 = sshll.u32 [#allocation7], 4
      %s46 = int_to_ptr.vmem [resolvable:$true] %s45
      %51 = dma.hbm_to_vmem [thread:$0]  %s44, 2048, %s46, [#allocation6], 128, 128, 8
    $region17: #{dbn_forward.1} parent=1 // pred_fallthru
      _
    // Predicated region
    $region18: #{dbn_forward.1} parent=1 // pred_check
      _
    $region19: #{dbn_forward.1} parent=1 // pred_check_branch
      %53 = sbr.rel (0) target = $region21
    $region20: #{dbn_forward.1} parent=1 // pred_region
      _
    $region21: #{dbn_forward.1} parent=1 // pred_fallthru
      _
    // Predicated region
    $region22: #{dbn_forward.1} parent=1 // pred_check
      _
    $region23: #{dbn_forward.1} parent=1 // pred_check_branch
      %55 = sbr.rel (0) target = $region25
    $region24: #{dbn_forward.1} parent=1 // pred_region
      %57 = dma.done [#allocation3], 32
    $region25: #{dbn_forward.1} parent=1 // pred_fallthru
      _
    // Predicated region
    $region26: #{dbn_forward.1} parent=1 // pred_check
      _
    $region27: #{dbn_forward.1} parent=1 // pred_check_branch
      %59 = sbr.rel (0) target = $region29
    $region28: #{dbn_forward.1} parent=1 // pred_region
      %61 = dma.done [#allocation6], 256
    $region29: #{dbn_forward.1} parent=1 // pred_fallthru
      _
    // Predicated region
    $region30: #{dbn_forward.1} parent=1 // pred_check
      _
    $region31: #{dbn_forward.1} parent=1 // pred_check_branch
      %63 = sbr.rel (0) target = $region33
    $region32: #{dbn_forward.1} parent=1 // pred_region
      %65 = dma.done [#allocation6], 2048
    $region33: #{dbn_forward.1} parent=1 // pred_fallthru
      _
    %v66 = vld [vmem:[#allocation2] sm:$0x3]
    %v67 = vld [vmem:[#allocation5] sm:$0xff]
    %v68 = vld [vmem:[#allocation5 + $0x8] sm:$0xff]
    %v69 = vld [vmem:[%s2] sm:$0x1]
    %v71 = vperm.slane %v69, 0
    %vm73 = vcmask 130048
    %v75 = vsel %vm73, %v66, 0
    %77 = vmatpush.msra.mxu0 0.0
    %78 = vmatpush.msra.mxu0 0.0
    %79 = vmatpush.msra.mxu0 0.0
    %80 = vmatpush.msra.mxu0 0.0
    %81 = vmatpush.msra.mxu0 0.0
    %82 = vmatpush.msra.mxu0 0.0
    %83 = vmatpush.msra.mxu0 0.0
    %84 = vmatpush.msra.mxu0 0.0
    %85 = vmatpush.msra.mxu0 0.0
    %86 = vmatpush.msra.mxu0 0.0
    %87 = vmatpush.msra.mxu0 0.0
    %88 = vmatpush.msra.mxu0 0.0
    %89 = vmatpush.msra.mxu0 0.0
    %90 = vmatpush.msra.mxu0 0.0
    %91 = vmatpush.msra.mxu0 %v68
    %92 = vmatpush.msra.mxu0 %v67
    %93 = vmatmul.f32.gmra.mxu0 %v75
    %v94 = vpop.f32.mrf.mxu0
    %v95 = vadd.f32 %v71, %v94
    %96 = vdwg.mxu0
    %v97 = vmax.f32 %v95, 0.0
    %v98 = vld [vmem:[#allocation7] sm:$0xff]
    %v99 = vld [vmem:[#allocation7 + $0x8] sm:$0xff]
    %v100 = vld [vmem:[#allocation7 + $0x10] sm:$0xff]
    %v101 = vld [vmem:[#allocation7 + $0x18] sm:$0xff]
    %v102 = vld [vmem:[#allocation7 + $0x20] sm:$0xff]
    %v103 = vld [vmem:[#allocation7 + $0x28] sm:$0xff]
    %v104 = vld [vmem:[#allocation7 + $0x30] sm:$0xff]
    %v105 = vld [vmem:[#allocation7 + $0x38] sm:$0xff]
    %v106 = vld [vmem:[#allocation7 + $0x40] sm:$0xff]
    %v107 = vld [vmem:[#allocation7 + $0x48] sm:$0xff]
    %v108 = vld [vmem:[#allocation7 + $0x50] sm:$0xff]
    %v109 = vld [vmem:[#allocation7 + $0x58] sm:$0xff]
    %v110 = vld [vmem:[#allocation7 + $0x60] sm:$0xff]
    %v111 = vld [vmem:[#allocation7 + $0x68] sm:$0xff]
    %v112 = vld [vmem:[#allocation7 + $0x70] sm:$0xff]
    %v113 = vld [vmem:[#allocation7 + $0x78] sm:$0xff]
    %114 = vmatpush.msra.mxu0 %v113
    %115 = vmatpush.msra.mxu0 %v112
    %116 = vmatpush.msra.mxu0 %v111
    %117 = vmatpush.msra.mxu0 %v110
    %118 = vmatpush.msra.mxu0 %v109
    %119 = vmatpush.msra.mxu0 %v108
    %120 = vmatpush.msra.mxu0 %v107
    %121 = vmatpush.msra.mxu0 %v106
    %122 = vmatpush.msra.mxu0 %v105
    %123 = vmatpush.msra.mxu0 %v104
    %124 = vmatpush.msra.mxu0 %v103
    %125 = vmatpush.msra.mxu0 %v102
    %126 = vmatpush.msra.mxu0 %v101
    %127 = vmatpush.msra.mxu0 %v100
    %128 = vmatpush.msra.mxu0 %v99
    %129 = vmatpush.msra.mxu0 %v98
    %130 = vmatmul.f32.gmra.mxu0 %v97
    %v131 = vpop.f32.mrf.mxu0
    %v132 = vadd.f32 0.0, %v131
    %133 = vdwg.mxu0
    %v134 = vld [vmem:[%s4] sm:$0x1]
    %v136 = vperm.slane %v134, 0
    %v138 = vadd.f32 %v132, %v136
    %v139 = vmax.f32 %v138, 0.0
    %vm140 = vcmask 17408
    %141 = vst.msk [vmem:[#allocation8] sm:$0x3] %vm140, %v139
    // Predicated region
    $region34: #{dbn_forward.1} parent=1 // pred_check
      _
    $region35: #{dbn_forward.1} parent=1 // pred_check_branch
      %143 = sbr.rel (0) target = $region37
    $region36: #{dbn_forward.1} parent=1 // pred_region
      %145 = vsyncadd [#allocation4], 0
      %s147 = sshll.u32 [#allocation8], 4
      %s148 = int_to_ptr.vmem [resolvable:$true] %s147
      %s149 = sshll.u32 %s5, 4
      %s150 = int_to_ptr.hbm [resolvable:$true] %s149
      %152 = dma.vmem_to_hbm [thread:$0]  %s148, 32, %s150, [#allocation4]
    $region37: #{dbn_forward.1} parent=1 // pred_fallthru
      _
    // Predicated region
    $region38: #{dbn_forward.1} parent=1 // pred_check
      _
    $region39: #{dbn_forward.1} parent=1 // pred_check_branch
      %154 = sbr.rel (0) target = $region41
    $region40: #{dbn_forward.1} parent=1 // pred_region
      %156 = dma.done [#allocation4], 32
    $region41: #{dbn_forward.1} parent=1 // pred_fallthru
      _
    %157 = vsyncpa [#allocation3], 1
    %158 = vsyncpa [#allocation6], 1
    %159 = vsyncpa [#allocation4], 1

</llo_original>
